<compile_context>
chip_gen: v7x
topology: tpu7x:2x2x1
jax: 0.10.0
libtpu: 0.0.40
codegen_flags: <defaults>
</compile_context>

<pallas_src>
import functools

import jax
import jax.numpy as jnp
from jax.experimental import pallas as pl
from jax.experimental.pallas import tpu as pltpu

LANES = 128
MAX_TILE_ROWS = 1024  # 2 inputs x 2 bufs x 1024x128x4B = 2 MiB, well within VMEM


def _l1_sum_kernel(a_ref, b_ref, out_ref, acc_ref, *, tile_rows, valid_rows,
                   needs_row_mask, inv_n):
    i = pl.program_id(0)

    @pl.when(i == 0)
    def _():
        acc_ref[...] = jnp.zeros_like(acc_ref)

    a = a_ref[...].astype(jnp.float32)
    b = b_ref[...].astype(jnp.float32)
    absdiff = jnp.abs(a - b)

    if needs_row_mask:
        # The last grid block may extend past `valid_rows`; those rows hold
        # undefined padding values, so zero them out before accumulating.
        row_ids = i * tile_rows + jax.lax.broadcasted_iota(
            jnp.int32, (tile_rows, LANES), 0)
        absdiff = jnp.where(row_ids < valid_rows, absdiff, 0.0)

    # Vector accumulator: per-step work stays on the VPU (hidden under DMA);
    # the expensive cross-lane reduction happens once at the end.
    acc_ref[...] += absdiff

    @pl.when(i == pl.num_programs(0) - 1)
    def _():
        total = jnp.sum(acc_ref[...], axis=(0, 1), keepdims=True)
        out_ref[...] = total * inv_n


def l1_loss(output, target):
    assert output.shape == target.shape
    n = output.size
    assert n > 0

    a = output.reshape(-1)
    b = target.reshape(-1)

    rows = pl.cdiv(n, LANES)
    padded_elems = rows * LANES
    if padded_elems != n:
        # Tiny tail pad (< 128 elements) so the flat array reshapes cleanly to
        # (rows, 128); padded entries are 0 in both arrays -> |0 - 0| = 0.
        pad = padded_elems - n
        a = jnp.pad(a, (0, pad))
        b = jnp.pad(b, (0, pad))
    a2 = a.reshape(rows, LANES)
    b2 = b.reshape(rows, LANES)

    if rows <= MAX_TILE_ROWS:
        tile_rows = rows  # full-dim block: always a legal block shape
    else:
        tile_rows = MAX_TILE_ROWS  # multiple of 8 -> legal sublane tiling
    grid = pl.cdiv(rows, tile_rows)
    needs_row_mask = (rows % tile_rows) != 0

    kernel = functools.partial(
        _l1_sum_kernel,
        tile_rows=tile_rows,
        valid_rows=rows,
        needs_row_mask=needs_row_mask,
        inv_n=1.0 / float(n),
    )

    in_spec = pl.BlockSpec((tile_rows, LANES), lambda i: (i, 0))

    result = pl.pallas_call(
        kernel,
        out_shape=jax.ShapeDtypeStruct((1, 1), jnp.float32),
        grid_spec=pltpu.PrefetchScalarGridSpec(
            num_scalar_prefetch=0,
            grid=(grid,),
            in_specs=[in_spec, in_spec],
            out_specs=pl.BlockSpec((1, 1), lambda i: (0, 0)),
            scratch_shapes=[pltpu.VMEM((tile_rows, LANES), jnp.float32)],
        ),
        compiler_params=pltpu.CompilerParams(
            dimension_semantics=("arbitrary",),
            vmem_limit_bytes=16 * 1024 * 1024,  # within v5e's scoped default
        ),
    )(a2, b2)

    # TODO(synk): optional v7x-only 2-way core split of the row range (two
    # partial sums combined in the wrapper) for dual-TensorCore HBM bandwidth.
    return result[0, 0]


if __name__ == "__main__":
    key = jax.random.PRNGKey(0)
    k1, k2 = jax.random.split(key)
    x = jax.random.normal(k1, (2, 4, 16, 16), dtype=jnp.float32)  # output
    y = jax.random.normal(k2, (2, 4, 16, 16), dtype=jnp.float32)  # target

    loss = l1_loss(x, y)
    jax.block_until_ready(loss)

    # Reference check (plain JAX)
    ref = jnp.mean(jnp.abs(x - y))
    assert jnp.allclose(loss, ref, rtol=1e-5, atol=1e-6), (loss, ref)

    print("KERNEL_OK")
</pallas_src>

<mosaic_0001>
module attributes {stable_mosaic.version = 11 : i64} {
  func.func @_l1_sum_kernel(%arg0: i32, %arg1: memref<16x128xf32, #tpu.memory_space<vmem>>, %arg2: memref<16x128xf32, #tpu.memory_space<vmem>>, %arg3: memref<1x1xf32, #tpu.memory_space<vmem>>, %arg4: memref<16x128xf32, #tpu.memory_space<vmem>>) attributes {dimension_semantics = [#tpu.dimension_semantics<arbitrary>], iteration_bounds = array<i64: 1>, scalar_prefetch = 0 : i64, scratch_operands = 1 : i64, tpu.core_type = #tpu.core_type<tc>, window_params = [{transform_indices = @transform_0, window_bounds = array<i64: 16, 128>}, {transform_indices = @transform_1, window_bounds = array<i64: 16, 128>}, {pipeline_mode = #tpu.pipeline_mode<synchronous>, transform_indices = @transform_2, window_bounds = array<i64: 1, 1>}]} {
    %c0_i32 = arith.constant 0 : i32
    %0 = arith.cmpi eq, %arg0, %c0_i32 : i32
    %1 = arith.extui %0 : i1 to i32
    %c0_i32_0 = arith.constant 0 : i32
    %2 = arith.cmpi ne, %1, %c0_i32_0 : i32
    scf.if %2 {
      %cst = arith.constant 0.000000e+00 : f32
      %13 = vector.broadcast %cst : f32 to vector<16x128xf32>
      %c0_10 = arith.constant 0 : index
      %c0_11 = arith.constant 0 : index
      %14 = vector.load %arg4[%c0_10, %c0_11] : memref<16x128xf32, #tpu.memory_space<vmem>>, vector<16x128xf32>
      tpu.vector_store %arg4[%c0_10, %c0_11], %13 {strides = array<i32>} : memref<16x128xf32, #tpu.memory_space<vmem>>, vector<16x128xf32>,
    } else {
    }
    %c0 = arith.constant 0 : index
    %c0_1 = arith.constant 0 : index
    %3 = vector.load %arg1[%c0, %c0_1] : memref<16x128xf32, #tpu.memory_space<vmem>>, vector<16x128xf32>
    %c0_2 = arith.constant 0 : index
    %c0_3 = arith.constant 0 : index
    %4 = vector.load %arg2[%c0_2, %c0_3] : memref<16x128xf32, #tpu.memory_space<vmem>>, vector<16x128xf32>
    %5 = arith.subf %3, %4 : vector<16x128xf32>
    %6 = math.absf %5 : vector<16x128xf32>
    %c0_4 = arith.constant 0 : index
    %c0_5 = arith.constant 0 : index
    %7 = vector.load %arg4[%c0_4, %c0_5] : memref<16x128xf32, #tpu.memory_space<vmem>>, vector<16x128xf32>
    %8 = arith.addf %7, %6 : vector<16x128xf32>
    %c0_6 = arith.constant 0 : index
    %c0_7 = arith.constant 0 : index
    %9 = vector.load %arg4[%c0_6, %c0_7] : memref<16x128xf32, #tpu.memory_space<vmem>>, vector<16x128xf32>
    tpu.vector_store %arg4[%c0_6, %c0_7], %8 {strides = array<i32>} : memref<16x128xf32, #tpu.memory_space<vmem>>, vector<16x128xf32>,
    %c0_i32_8 = arith.constant 0 : i32
    %10 = arith.cmpi eq, %arg0, %c0_i32_8 : i32
    %11 = arith.extui %10 : i1 to i32
    %c0_i32_9 = arith.constant 0 : i32
    %12 = arith.cmpi ne, %11, %c0_i32_9 : i32
    scf.if %12 {
      %c0_10 = arith.constant 0 : index
      %c0_11 = arith.constant 0 : index
      %13 = vector.load %arg4[%c0_10, %c0_11] : memref<16x128xf32, #tpu.memory_space<vmem>>, vector<16x128xf32>
      %14 = vector.shape_cast %13 : vector<16x128xf32> to vector<1x16x128xf32>
      %cst = arith.constant dense<0.000000e+00> : vector<1xf32>
      %15 = vector.multi_reduction <add>, %14, %cst [1, 2] : vector<1x16x128xf32> to vector<1xf32>
      %16 = vector.shape_cast %15 : vector<1xf32> to vector<1x1x1xf32>
      %17 = vector.extract %16[0, 0, 0] : f32 from vector<1x1x1xf32>
      %18 = vector.broadcast %17 : f32 to vector<1x1xf32>
      %cst_12 = arith.constant 4.8828125E-4 : f32
      %19 = vector.broadcast %cst_12 : f32 to vector<1x1xf32>
      %20 = arith.mulf %18, %19 : vector<1x1xf32>
      %c0_13 = arith.constant 0 : index
      %c0_14 = arith.constant 0 : index
      %21 = vector.load %arg3[%c0_13, %c0_14] : memref<1x1xf32, #tpu.memory_space<vmem>>, vector<1x1xf32>
      tpu.vector_store %arg3[%c0_13, %c0_14], %20 {strides = array<i32>} : memref<1x1xf32, #tpu.memory_space<vmem>>, vector<1x1xf32>,
    } else {
    }
    return
  }
  func.func @transform_0(%arg0: i32) -> (i32, i32) {
    %c0_i32 = arith.constant 0 : i32
    %c0_i32_0 = arith.constant 0 : i32
    return %arg0, %c0_i32 : i32, i32
  }
  func.func @transform_1(%arg0: i32) -> (i32, i32) {
    %c0_i32 = arith.constant 0 : i32
    %c0_i32_0 = arith.constant 0 : i32
    return %arg0, %c0_i32 : i32, i32
  }
  func.func @transform_2(%arg0: i32) -> (i32, i32) {
    %c0_i32 = arith.constant 0 : i32
    %c0_i32_0 = arith.constant 0 : i32
    %c0_i32_1 = arith.constant 0 : i32
    return %c0_i32, %c0_i32_0 : i32, i32
  }
}

</mosaic_0001>

<llo_original>
// kernel: tpu_custom_call.1
$region0: #{tpu_custom_call.1}
  #allocation0 [shape = 'u32[]', space=smem, size = 0x4, offset = 0x4, fixed_abs, tag = 'smem constant byte address 0x4 - core index']
  #allocation1 [shape = 'u32[144,128]{1,0:T(1,128)}', space=vmem, size = 0x12000, scoped, tag = 'internal scratch']
  #allocation2 [shape = 'f32[16,128]{1,0:T(8,128)}', space=vmem, size = 0x2000, scoped, tag = 'scratch operand']
  %s0 = inlined_call_operand.hbm [shape: f32[16,128], index: 0, kind: input, shape index: {}]
  %s1 = inlined_call_operand.hbm [shape: f32[16,128], index: 1, kind: input, shape index: {}]
  %s2 = inlined_call_operand.hbm [shape: f32[1,1], index: 2, kind: output, shape index: {}]
  %s3 = sld [smem:[#allocation0]]
  $region34: #{tpu_custom_call.1} parent=0
    _
  %s5 = ssub.s32 1, %s3
  %s6 = scalar_select 0, %s5, %s3
  $region1: #{tpu_custom_call.1} parent=0
    #allocation3 [shape = 'u8[8192]{0}', space=vmem, size = 0x2000, scoped, tag = 'input window, operand 0, single buffered']
    #allocation4 [shape = 's32[1]{0}', space=sflag, size = 0x4, scoped, tag = 'scoped memory for tpu_custom_call.1']
    #allocation5 [shape = 's32[1]{0}', space=sflag, size = 0x4, scoped, tag = 'scoped memory for tpu_custom_call.1']
    #allocation6 [shape = 'u8[8192]{0}', space=vmem, size = 0x2000, scoped, tag = 'input window, operand 1, single buffered']
    #allocation7 [shape = 's32[1]{0}', space=sflag, size = 0x4, scoped, tag = 'scoped memory for tpu_custom_call.1']
    #allocation8 [shape = 'u8[512]{0}', space=vmem, size = 0x400, scoped, tag = 'output window, operand 0, single buffered']
    %7 = vsyncpa [#allocation4], 0
    %8 = vsyncpa [#allocation7], 0
    %9 = vsyncpa [#allocation5], 0
    // Predicated region
    $region2: #{tpu_custom_call.1} parent=1 // pred_check
      _
    $region3: #{tpu_custom_call.1} parent=1 // pred_check_branch
      %11 = sbr.rel (0) target = $region5
    $region4: #{tpu_custom_call.1} parent=1 // pred_region
      %s13 = ssub.s32 256, 256
      %14 = vsyncadd [#allocation4], %s13
      %s15 = sshll.u32 [#allocation3], 4
      %s16 = int_to_ptr.vmem [resolvable:$true] %s15
      %21 = dma.hbm_to_vmem [thread:$0]  %s0, 256, %s16, [#allocation4], 128, 128, 8
    $region5: #{tpu_custom_call.1} parent=1 // pred_fallthru
      _
    // Predicated region
    $region6: #{tpu_custom_call.1} parent=1 // pred_check
      _
    $region7: #{tpu_custom_call.1} parent=1 // pred_check_branch
      %23 = sbr.rel (0) target = $region9
    $region8: #{tpu_custom_call.1} parent=1 // pred_region
      %s25 = ssub.s32 256, 256
      %26 = vsyncadd [#allocation7], %s25
      %s27 = sshll.u32 [#allocation6], 4
      %s28 = int_to_ptr.vmem [resolvable:$true] %s27
      %33 = dma.hbm_to_vmem [thread:$0]  %s1, 256, %s28, [#allocation7], 128, 128, 8
    $region9: #{tpu_custom_call.1} parent=1 // pred_fallthru
      _
    // Predicated region
    $region10: #{tpu_custom_call.1} parent=1 // pred_check
      _
    $region11: #{tpu_custom_call.1} parent=1 // pred_check_branch
      %35 = sbr.rel (0) target = $region13
    $region12: #{tpu_custom_call.1} parent=1 // pred_region
      %36 = dma.done [#allocation4], 256
    $region13: #{tpu_custom_call.1} parent=1 // pred_fallthru
      _
    // Predicated region
    $region14: #{tpu_custom_call.1} parent=1 // pred_check
      _
    $region15: #{tpu_custom_call.1} parent=1 // pred_check_branch
      %38 = sbr.rel (0) target = $region17
    $region16: #{tpu_custom_call.1} parent=1 // pred_region
      %39 = dma.done [#allocation7], 256
    $region17: #{tpu_custom_call.1} parent=1 // pred_fallthru
      _
    %p40 = scmp.eq.s32.totalorder 0, 0
    // Predicated region
    $region18: #{tpu_custom_call.1} parent=1 // pred_check
      %p41 = pneg %p40
    $region19: #{tpu_custom_call.1} parent=1 // pred_check_branch
      %43 = sbr.rel (%p41) target = $region21
    $region20: #{tpu_custom_call.1} parent=1 // pred_region
      %44 = vst [vmem:[#allocation2] sm:$0xff] 0.0
      %45 = vst [vmem:[#allocation2 + $0x8] sm:$0xff] 0.0
    $region21: #{tpu_custom_call.1} parent=1 // pred_fallthru
      _
    %v46 = vld [vmem:[#allocation3] sm:$0xff]
    %v47 = vld [vmem:[#allocation3 + $0x8] sm:$0xff]
    %v48 = vld [vmem:[#allocation6] sm:$0xff]
    %v49 = vld [vmem:[#allocation6 + $0x8] sm:$0xff]
    %v50 = vsub.f32 %v46, %v48
    %v51 = vsub.f32 %v47, %v49
    %v52 = vand.u32 2147483647, %v50
    %v53 = vand.u32 2147483647, %v51
    %v54 = vld [vmem:[#allocation2] sm:$0xff]
    %v55 = vld [vmem:[#allocation2 + $0x8] sm:$0xff]
    %v56 = vadd.f32 %v54, %v52
    %v57 = vadd.f32 %v55, %v53
    %58 = vst [vmem:[#allocation2] sm:$0xff] %v56
    %59 = vst [vmem:[#allocation2 + $0x8] sm:$0xff] %v57
    // Predicated region
    $region22: #{tpu_custom_call.1} parent=1 // pred_check
      %p60 = pneg %p40
    $region23: #{tpu_custom_call.1} parent=1 // pred_check_branch
      %62 = sbr.rel (%p60) target = $region25
    $region24: #{tpu_custom_call.1} parent=1 // pred_region
      %v63 = vld [vmem:[#allocation2] sm:$0xff]
      %v64 = vld [vmem:[#allocation2 + $0x8] sm:$0xff]
      %v65 = vadd.f32 %v63, %v64
      %66 = vadd.xlane.f32.xlu0 %v65
      %v67 = vpop.xlane.xlu0 %66
      %v68 = vrot.slane %v67, 4
      %v69 = vadd.f32 %v67, %v68
      %v70 = vrot.slane %v69, 2
      %v71 = vadd.f32 %v69, %v70
      %v72 = vrot.slane %v71, 1
      %v73 = vadd.f32 %v71, %v72
      %s74 = vtos %v73
      %v75 = vstv %s74
      %v76 = vmul.f32 %v75, 0.00048828125
      %vm77 = vcmask 0
      %78 = vst.msk [vmem:[#allocation8] sm:$0x1] %vm77, %v76
    $region25: #{tpu_custom_call.1} parent=1 // pred_fallthru
      _
    // Predicated region
    $region26: #{tpu_custom_call.1} parent=1 // pred_check
      _
    $region27: #{tpu_custom_call.1} parent=1 // pred_check_branch
      %80 = sbr.rel (0) target = $region29
    $region28: #{tpu_custom_call.1} parent=1 // pred_region
      %s82 = ssub.s32 16, 16
      %83 = vsyncadd [#allocation5], %s82
      %s85 = sshll.u32 [#allocation8], 4
      %s86 = int_to_ptr.vmem [resolvable:$true] %s85
      %88 = dma.vmem_to_hbm [thread:$0]  %s86, 16, %s2, [#allocation5]
    $region29: #{tpu_custom_call.1} parent=1 // pred_fallthru
      _
    // Predicated region
    $region30: #{tpu_custom_call.1} parent=1 // pred_check
      _
    $region31: #{tpu_custom_call.1} parent=1 // pred_check_branch
      %90 = sbr.rel (0) target = $region33
    $region32: #{tpu_custom_call.1} parent=1 // pred_region
      %91 = dma.done [#allocation5], 16
    $region33: #{tpu_custom_call.1} parent=1 // pred_fallthru
      _
    %92 = vsyncpa [#allocation4], 1
    %93 = vsyncpa [#allocation7], 1
    %94 = vsyncpa [#allocation5], 1

</llo_original>
